<compile_context>
chip_gen: v7x
topology: tpu7x:2x2x1
jax: 0.10.0
libtpu: 0.0.40
codegen_flags: <defaults>
</compile_context>

<pallas_src>
import jax
import jax.numpy as jnp
from jax.experimental import pallas as pl
from jax.experimental.pallas import tpu as pltpu

_VMEM_LIMIT = 32 * 1024 * 1024


# ------------------------------------------------------------------ Pallas kernels

def _stats_kernel(x_ref, sum_ref, sq_ref):
    """Per-channel sum / sum-of-squares over time tiles of one batch row.

    x_ref: (C, TL) f32 block of x[b];  sum_ref/sq_ref: (C, 1) f32 accumulators for b.
    """
    @pl.when(pl.program_id(1) == 0)
    def _():
        sum_ref[...] = jnp.zeros_like(sum_ref)
        sq_ref[...] = jnp.zeros_like(sq_ref)

    x = x_ref[...]                                     # (C, TL) f32
    sum_ref[...] += jnp.sum(x, axis=-1, keepdims=True)
    sq_ref[...] += jnp.sum(x * x, axis=-1, keepdims=True)


def _bn_relu_conv_pool_kernel(x_ref, s_ref, b_ref, w_ref, p_ref, o_ref):
    """Fused BN-affine + ReLU + 1x1 conv + AvgPool1d(2,2), native (C, L) layout.

    x_ref: (C_in, 2*tt) f32      s_ref/b_ref: (C_in, 1) f32 (0.5 pool factor folded in)
    w_ref: (C_out, C_in) bf16    p_ref: (2*tt, tt) bf16 pair-sum matrix
    o_ref: (C_out, tt)
    """
    h = jnp.maximum(x_ref[...] * s_ref[...] + b_ref[...], 0.0).astype(jnp.bfloat16)
    y = jnp.dot(w_ref[...], h, preferred_element_type=jnp.float32)       # (Cout, 2tt)
    o = jnp.dot(y.astype(jnp.bfloat16), p_ref[...],
                preferred_element_type=jnp.float32)                      # (Cout, tt)
    o_ref[...] = o.astype(o_ref.dtype)


def _bn_relu_conv_kernel(x_ref, s_ref, b_ref, w_ref, o_ref):
    """Fused BN-affine + ReLU + 1x1 conv (no pooling; used for L == 1)."""
    h = jnp.maximum(x_ref[...] * s_ref[...] + b_ref[...], 0.0).astype(jnp.bfloat16)
    o_ref[...] = jnp.dot(w_ref[...], h,
                         preferred_element_type=jnp.float32).astype(o_ref.dtype)


# ------------------------------------------------------------------ helpers

def _pick_time_tile(n, batch, cap=1024, min_steps=8):
    """Largest 128-multiple tile <= cap dividing n; prefer >= min_steps grid steps."""
    cands = [t for t in (1024, 512, 256, 128) if t <= cap and n % t == 0]
    for t in cands:
        if batch * (n // t) >= min_steps:
            return t
    if cands:
        return cands[-1]        # smallest dividing candidate -> most grid steps
    # TODO(synk): for very large ragged n, pad/mask a 128-multiple tile instead of a
    # full-extent block (a full-extent block could exceed v7x's 64 MiB VMEM).
    return n


def _batch_norm_stats(x):
    """x: (B, C, L) f32 -> per-channel (sum, sum_sq) as (C,) f32 arrays."""
    B, C, L = x.shape
    tl = _pick_time_tile(L, B, cap=1024)
    ssum, ssq = pl.pallas_call(
        _stats_kernel,
        grid=(B, L // tl),
        in_specs=[pl.BlockSpec((None, C, tl), lambda b, l: (b, 0, l))],
        out_specs=[pl.BlockSpec((None, C, 1), lambda b, l: (b, 0, 0)),
                   pl.BlockSpec((None, C, 1), lambda b, l: (b, 0, 0))],
        out_shape=(jax.ShapeDtypeStruct((B, C, 1), jnp.float32),
                   jax.ShapeDtypeStruct((B, C, 1), jnp.float32)),
        compiler_params=pltpu.CompilerParams(
            dimension_semantics=("parallel", "arbitrary"),
            vmem_limit_bytes=_VMEM_LIMIT),
    )(x)
    # Tiny (B, C) partials -> final reduction in JAX (lets v7x shard batch over TCs).
    return jnp.sum(ssum[:, :, 0], axis=0), jnp.sum(ssq[:, :, 0], axis=0)


# ------------------------------------------------------------------ forward pass

def transition_layer(x_ncl, params, eps=1e-5, out_dtype=jnp.float32):
    """Forward pass of TransitionLayer. x_ncl: (B, C_in, L) -> (B, C_out, L_out)."""
    gamma = params["bn_gamma"].astype(jnp.float32)
    beta = params["bn_beta"].astype(jnp.float32)
    w = params["conv_w"]                               # (C_out, C_in), bf16
    B, C, L = x_ncl.shape
    Cout = w.shape[0]
    x = x_ncl.astype(jnp.float32)

    # Training-mode BatchNorm1d batch statistics (biased variance).
    ssum, ssq = _batch_norm_stats(x)
    n = jnp.float32(B * L)
    mean = ssum / n
    var = jnp.maximum(ssq / n - mean * mean, 0.0)
    # TODO(synk): single-pass E[x^2]-E[x]^2 can lose precision for large-mean data;
    # switch to a two-pass variance if strict PyTorch BN parity is required.
    inv = gamma / jnp.sqrt(var + eps)
    scale = inv
    shift = beta - mean * inv

    pool = L > 1                                        # PyTorch: pool only if L > 1
    if pool:
        # Fold the 0.5 avg-pool factor into BN scale/shift (exact: ReLU is
        # positively homogeneous and the 1x1 conv is linear).
        scale = scale * 0.5
        shift = shift * 0.5
    scale = scale.reshape(C, 1)
    shift = shift.reshape(C, 1)

    cparams = pltpu.CompilerParams(
        dimension_semantics=("parallel", "parallel"),
        vmem_limit_bytes=_VMEM_LIMIT)

    if pool:
        L_even = 2 * (L // 2)                           # AvgPool1d(2,2) floor mode
        Lout = L_even // 2
        if L_even != L:
            x = x[:, :, :L_even]                        # drop trailing odd time step
        tt = _pick_time_tile(Lout, B, cap=512)
        # Pair-sum matrix: P[i, j] = 1 iff i // 2 == j  (pooling as an MXU matmul;
        # resident in VMEM across grid steps since its block index is constant).
        p = (jnp.arange(2 * tt)[:, None] // 2
             == jnp.arange(tt)[None, :]).astype(jnp.bfloat16)
        out = pl.pallas_call(
            _bn_relu_conv_pool_kernel,
            grid=(B, Lout // tt),
            in_specs=[pl.BlockSpec((None, C, 2 * tt), lambda b, t: (b, 0, t)),
                      pl.BlockSpec((C, 1), lambda b, t: (0, 0)),
                      pl.BlockSpec((C, 1), lambda b, t: (0, 0)),
                      pl.BlockSpec((Cout, C), lambda b, t: (0, 0)),
                      pl.BlockSpec((2 * tt, tt), lambda b, t: (0, 0))],
            out_specs=pl.BlockSpec((None, Cout, tt), lambda b, t: (b, 0, t)),
            out_shape=jax.ShapeDtypeStruct((B, Cout, Lout), out_dtype),
            compiler_params=cparams,
        )(x, scale, shift, w, p)
    else:
        tt = _pick_time_tile(L, B, cap=1024)
        out = pl.pallas_call(
            _bn_relu_conv_kernel,
            grid=(B, L // tt),
            in_specs=[pl.BlockSpec((None, C, tt), lambda b, t: (b, 0, t)),
                      pl.BlockSpec((C, 1), lambda b, t: (0, 0)),
                      pl.BlockSpec((C, 1), lambda b, t: (0, 0)),
                      pl.BlockSpec((Cout, C), lambda b, t: (0, 0))],
            out_specs=pl.BlockSpec((None, Cout, tt), lambda b, t: (b, 0, t)),
            out_shape=jax.ShapeDtypeStruct((B, Cout, L), out_dtype),
            compiler_params=cparams,
        )(x, scale, shift, w)

    return out                                          # already (B, C_out, L_out)


# ------------------------------------------------------------------ pure-JAX reference

def transition_layer_reference(x_ncl, params, eps=1e-5):
    gamma = params["bn_gamma"].astype(jnp.float32)
    beta = params["bn_beta"].astype(jnp.float32)
    w = params["conv_w"].astype(jnp.float32)            # (C_out, C_in)
    x = x_ncl.astype(jnp.float32)
    mean = jnp.mean(x, axis=(0, 2), keepdims=True)
    var = jnp.mean((x - mean) ** 2, axis=(0, 2), keepdims=True)
    xn = (x - mean) / jnp.sqrt(var + eps) * gamma[None, :, None] + beta[None, :, None]
    h = jnp.maximum(xn, 0.0)
    out = jnp.einsum("oc,bcl->bol", w, h)               # 1x1 conv, no bias
    B, Cout, L = out.shape
    if L > 1:
        Le = 2 * (L // 2)
        out = out[:, :, :Le].reshape(B, Cout, Le // 2, 2).mean(axis=-1)
    return out


# ------------------------------------------------------------------ main

if __name__ == "__main__":
    B, C_in, C_out, L = 2, 64, 32, 256
    key = jax.random.PRNGKey(0)
    k_w, k_g, k_b, k_x, k_x1, k_x2 = jax.random.split(key, 6)

    params = {
        "bn_gamma": 0.5 + jax.random.uniform(k_g, (C_in,), jnp.float32),
        "bn_beta": 0.1 * jax.random.normal(k_b, (C_in,), jnp.float32),
        # Conv1d(k=1) weight (C_out, C_in), stored bf16 for the MXU.
        "conv_w": (jnp.sqrt(2.0 / C_in)
                   * jax.random.normal(k_w, (C_out, C_in), jnp.float32)
                   ).astype(jnp.bfloat16),
    }

    fwd = jax.jit(transition_layer)

    # Pooling path (even L).
    x = jax.random.normal(k_x, (B, C_in, L), jnp.float32)
    out = jax.block_until_ready(fwd(x, params))
    ref = transition_layer_reference(x, params)
    assert out.shape == (B, C_out, L // 2), out.shape
    assert bool(jnp.all(jnp.isfinite(out)))
    assert float(jnp.max(jnp.abs(out - ref))) < 5e-2, float(jnp.max(jnp.abs(out - ref)))

    # Pooling path with odd L (trailing time step dropped, PyTorch floor mode).
    x2 = jax.random.normal(k_x2, (B, C_in, 7), jnp.float32)
    out2 = jax.block_until_ready(fwd(x2, params))
    ref2 = transition_layer_reference(x2, params)
    assert out2.shape == (B, C_out, 3), out2.shape
    assert float(jnp.max(jnp.abs(out2 - ref2))) < 5e-2

    # No-pooling path (L == 1).
    x1 = jax.random.normal(k_x1, (B, C_in, 1), jnp.float32)
    out1 = jax.block_until_ready(fwd(x1, params))
    ref1 = transition_layer_reference(x1, params)
    assert out1.shape == (B, C_out, 1), out1.shape
    assert float(jnp.max(jnp.abs(out1 - ref1))) < 5e-2

    print("KERNEL_OK")
</pallas_src>

<mosaic_0001>
module attributes {stable_mosaic.version = 11 : i64} {
  func.func @_stats_kernel(%arg0: i32, %arg1: i32, %arg2: memref<1x64x128xf32, #tpu.memory_space<vmem>>, %arg3: memref<1x64x1xf32, #tpu.memory_space<vmem>>, %arg4: memref<1x64x1xf32, #tpu.memory_space<vmem>>) attributes {dimension_semantics = [#tpu.dimension_semantics<parallel>, #tpu.dimension_semantics<arbitrary>], iteration_bounds = array<i64: 2, 2>, scalar_prefetch = 0 : i64, scratch_operands = 0 : i64, tpu.core_type = #tpu.core_type<tc>, window_params = [{transform_indices = @transform_0, window_bounds = array<i64: 1, 64, 128>}, {transform_indices = @transform_1, window_bounds = array<i64: 1, 64, 1>}, {transform_indices = @transform_2, window_bounds = array<i64: 1, 64, 1>}]} {
    %c0_i32 = arith.constant 0 : i32
    %0 = arith.cmpi eq, %arg1, %c0_i32 : i32
    %1 = arith.extui %0 : i1 to i32
    %c0_i32_0 = arith.constant 0 : i32
    %2 = arith.cmpi ne, %1, %c0_i32_0 : i32
    scf.if %2 {
      %cst_16 = arith.constant 0.000000e+00 : f32
      %22 = vector.broadcast %cst_16 : f32 to vector<64x1xf32>
      %c0_17 = arith.constant 0 : index
      %c0_18 = arith.constant 0 : index
      %c0_19 = arith.constant 0 : index
      %23 = vector.load %arg3[%c0_17, %c0_18, %c0_19] : memref<1x64x1xf32, #tpu.memory_space<vmem>>, vector<1x64x1xf32>
      %24 = vector.shape_cast %23 : vector<1x64x1xf32> to vector<64x1xf32>
      %25 = vector.shape_cast %22 : vector<64x1xf32> to vector<1x64x1xf32>
      tpu.vector_store %arg3[%c0_17, %c0_18, %c0_19], %25 {strides = array<i32>} : memref<1x64x1xf32, #tpu.memory_space<vmem>>, vector<1x64x1xf32>,
      %cst_20 = arith.constant 0.000000e+00 : f32
      %26 = vector.broadcast %cst_20 : f32 to vector<64x1xf32>
      %c0_21 = arith.constant 0 : index
      %c0_22 = arith.constant 0 : index
      %c0_23 = arith.constant 0 : index
      %27 = vector.load %arg4[%c0_21, %c0_22, %c0_23] : memref<1x64x1xf32, #tpu.memory_space<vmem>>, vector<1x64x1xf32>
      %28 = vector.shape_cast %27 : vector<1x64x1xf32> to vector<64x1xf32>
      %29 = vector.shape_cast %26 : vector<64x1xf32> to vector<1x64x1xf32>
      tpu.vector_store %arg4[%c0_21, %c0_22, %c0_23], %29 {strides = array<i32>} : memref<1x64x1xf32, #tpu.memory_space<vmem>>, vector<1x64x1xf32>,
    } else {
    }
    %c0 = arith.constant 0 : index
    %c0_1 = arith.constant 0 : index
    %c0_2 = arith.constant 0 : index
    %3 = vector.load %arg2[%c0, %c0_1, %c0_2] : memref<1x64x128xf32, #tpu.memory_space<vmem>>, vector<1x64x128xf32>
    %4 = vector.shape_cast %3 : vector<1x64x128xf32> to vector<64x128xf32>
    %c0_3 = arith.constant 0 : index
    %c0_4 = arith.constant 0 : index
    %c0_5 = arith.constant 0 : index
    %5 = vector.load %arg3[%c0_3, %c0_4, %c0_5] : memref<1x64x1xf32, #tpu.memory_space<vmem>>, vector<1x64x1xf32>
    %6 = vector.shape_cast %5 : vector<1x64x1xf32> to vector<64x1xf32>
    %cst = arith.constant dense<0.000000e+00> : vector<64xf32>
    %7 = vector.multi_reduction <add>, %4, %cst [1] : vector<64x128xf32> to vector<64xf32>
    %8 = vector.shape_cast %7 : vector<64xf32> to vector<64x1xf32>
    %9 = arith.addf %6, %8 : vector<64x1xf32>
    %c0_6 = arith.constant 0 : index
    %c0_7 = arith.constant 0 : index
    %c0_8 = arith.constant 0 : index
    %10 = vector.load %arg3[%c0_6, %c0_7, %c0_8] : memref<1x64x1xf32, #tpu.memory_space<vmem>>, vector<1x64x1xf32>
    %11 = vector.shape_cast %10 : vector<1x64x1xf32> to vector<64x1xf32>
    %12 = vector.shape_cast %9 : vector<64x1xf32> to vector<1x64x1xf32>
    tpu.vector_store %arg3[%c0_6, %c0_7, %c0_8], %12 {strides = array<i32>} : memref<1x64x1xf32, #tpu.memory_space<vmem>>, vector<1x64x1xf32>,
    %c0_9 = arith.constant 0 : index
    %c0_10 = arith.constant 0 : index
    %c0_11 = arith.constant 0 : index
    %13 = vector.load %arg4[%c0_9, %c0_10, %c0_11] : memref<1x64x1xf32, #tpu.memory_space<vmem>>, vector<1x64x1xf32>
    %14 = vector.shape_cast %13 : vector<1x64x1xf32> to vector<64x1xf32>
    %15 = arith.mulf %4, %4 : vector<64x128xf32>
    %cst_12 = arith.constant dense<0.000000e+00> : vector<64xf32>
    %16 = vector.multi_reduction <add>, %15, %cst_12 [1] : vector<64x128xf32> to vector<64xf32>
    %17 = vector.shape_cast %16 : vector<64xf32> to vector<64x1xf32>
    %18 = arith.addf %14, %17 : vector<64x1xf32>
    %c0_13 = arith.constant 0 : index
    %c0_14 = arith.constant 0 : index
    %c0_15 = arith.constant 0 : index
    %19 = vector.load %arg4[%c0_13, %c0_14, %c0_15] : memref<1x64x1xf32, #tpu.memory_space<vmem>>, vector<1x64x1xf32>
    %20 = vector.shape_cast %19 : vector<1x64x1xf32> to vector<64x1xf32>
    %21 = vector.shape_cast %18 : vector<64x1xf32> to vector<1x64x1xf32>
    tpu.vector_store %arg4[%c0_13, %c0_14, %c0_15], %21 {strides = array<i32>} : memref<1x64x1xf32, #tpu.memory_space<vmem>>, vector<1x64x1xf32>,
    return
  }
  func.func @transform_0(%arg0: i32, %arg1: i32) -> (i32, i32, i32) {
    %c0_i32 = arith.constant 0 : i32
    %c0_i32_0 = arith.constant 0 : i32
    return %arg0, %c0_i32, %arg1 : i32, i32, i32
  }
  func.func @transform_1(%arg0: i32, %arg1: i32) -> (i32, i32, i32) {
    %c0_i32 = arith.constant 0 : i32
    %c0_i32_0 = arith.constant 0 : i32
    %c0_i32_1 = arith.constant 0 : i32
    return %arg0, %c0_i32, %c0_i32_0 : i32, i32, i32
  }
  func.func @transform_2(%arg0: i32, %arg1: i32) -> (i32, i32, i32) {
    %c0_i32 = arith.constant 0 : i32
    %c0_i32_0 = arith.constant 0 : i32
    %c0_i32_1 = arith.constant 0 : i32
    return %arg0, %c0_i32, %c0_i32_0 : i32, i32, i32
  }
}

module attributes {stable_mosaic.version = 11 : i64} {
  func.func @_bn_relu_conv_pool_kernel(%arg0: i32, %arg1: i32, %arg2: memref<1x64x256xf32, #tpu.memory_space<vmem>>, %arg3: memref<64x1xf32, #tpu.memory_space<vmem>>, %arg4: memref<64x1xf32, #tpu.memory_space<vmem>>, %arg5: memref<32x64xbf16, #tpu.memory_space<vmem>>, %arg6: memref<256x128xbf16, #tpu.memory_space<vmem>>, %arg7: memref<1x32x128xf32, #tpu.memory_space<vmem>>) attributes {dimension_semantics = [#tpu.dimension_semantics<parallel>, #tpu.dimension_semantics<parallel>], iteration_bounds = array<i64: 2, 1>, scalar_prefetch = 0 : i64, scratch_operands = 0 : i64, tpu.core_type = #tpu.core_type<tc>, window_params = [{transform_indices = @transform_0, window_bounds = array<i64: 1, 64, 256>}, {pipeline_mode = #tpu.pipeline_mode<synchronous>, transform_indices = @transform_1, window_bounds = array<i64: 64, 1>}, {pipeline_mode = #tpu.pipeline_mode<synchronous>, transform_indices = @transform_2, window_bounds = array<i64: 64, 1>}, {pipeline_mode = #tpu.pipeline_mode<synchronous>, transform_indices = @transform_3, window_bounds = array<i64: 32, 64>}, {pipeline_mode = #tpu.pipeline_mode<synchronous>, transform_indices = @transform_4, window_bounds = array<i64: 256, 128>}, {transform_indices = @transform_5, window_bounds = array<i64: 1, 32, 128>}]} {
    %c0 = arith.constant 0 : index
    %c0_0 = arith.constant 0 : index
    %c0_1 = arith.constant 0 : index
    %0 = vector.load %arg2[%c0, %c0_0, %c0_1] : memref<1x64x256xf32, #tpu.memory_space<vmem>>, vector<1x64x256xf32>
    %1 = vector.shape_cast %0 : vector<1x64x256xf32> to vector<64x256xf32>
    %c0_2 = arith.constant 0 : index
    %c0_3 = arith.constant 0 : index
    %2 = vector.load %arg3[%c0_2, %c0_3] : memref<64x1xf32, #tpu.memory_space<vmem>>, vector<64x1xf32>
    %3 = vector.broadcast %2 : vector<64x1xf32> to vector<64x256xf32>
    %4 = arith.mulf %1, %3 : vector<64x256xf32>
    %c0_4 = arith.constant 0 : index
    %c0_5 = arith.constant 0 : index
    %5 = vector.load %arg4[%c0_4, %c0_5] : memref<64x1xf32, #tpu.memory_space<vmem>>, vector<64x1xf32>
    %6 = vector.broadcast %5 : vector<64x1xf32> to vector<64x256xf32>
    %7 = arith.addf %4, %6 : vector<64x256xf32>
    %cst = arith.constant 0.000000e+00 : f32
    %8 = vector.broadcast %cst : f32 to vector<64x256xf32>
    %9 = arith.maximumf %7, %8 : vector<64x256xf32>
    %10 = arith.truncf %9 : vector<64x256xf32> to vector<64x256xbf16>
    %c0_6 = arith.constant 0 : index
    %c0_7 = arith.constant 0 : index
    %11 = vector.load %arg5[%c0_6, %c0_7] : memref<32x64xbf16, #tpu.memory_space<vmem>>, vector<32x64xbf16>
    %cst_8 = arith.constant dense<0.000000e+00> : vector<32x256xf32>
    %12 = tpu.matmul %11, %10, %cst_8 {dimension_numbers = #tpu.dot_dimension_numbers<[1], [0], [0], [1], [0, 0, 1, 1], [], []>} : vector<32x64xbf16>, vector<64x256xbf16>, vector<32x256xf32> -> vector<32x256xf32>
    %13 = arith.truncf %12 : vector<32x256xf32> to vector<32x256xbf16>
    %c0_9 = arith.constant 0 : index
    %c0_10 = arith.constant 0 : index
    %14 = vector.load %arg6[%c0_9, %c0_10] : memref<256x128xbf16, #tpu.memory_space<vmem>>, vector<256x128xbf16>
    %cst_11 = arith.constant dense<0.000000e+00> : vector<32x128xf32>
    %15 = tpu.matmul %13, %14, %cst_11 {dimension_numbers = #tpu.dot_dimension_numbers<[1], [0], [0], [1], [0, 0, 1, 1], [], []>} : vector<32x256xbf16>, vector<256x128xbf16>, vector<32x128xf32> -> vector<32x128xf32>
    %c0_12 = arith.constant 0 : index
    %c0_13 = arith.constant 0 : index
    %c0_14 = arith.constant 0 : index
    %16 = vector.load %arg7[%c0_12, %c0_13, %c0_14] : memref<1x32x128xf32, #tpu.memory_space<vmem>>, vector<1x32x128xf32>
    %17 = vector.shape_cast %16 : vector<1x32x128xf32> to vector<32x128xf32>
    %18 = vector.shape_cast %15 : vector<32x128xf32> to vector<1x32x128xf32>
    tpu.vector_store %arg7[%c0_12, %c0_13, %c0_14], %18 {strides = array<i32>} : memref<1x32x128xf32, #tpu.memory_space<vmem>>, vector<1x32x128xf32>,
    return
  }
  func.func @transform_0(%arg0: i32, %arg1: i32) -> (i32, i32, i32) {
    %c0_i32 = arith.constant 0 : i32
    %c0_i32_0 = arith.constant 0 : i32
    return %arg0, %c0_i32, %arg1 : i32, i32, i32
  }
  func.func @transform_1(%arg0: i32, %arg1: i32) -> (i32, i32) {
    %c0_i32 = arith.constant 0 : i32
    %c0_i32_0 = arith.constant 0 : i32
    %c0_i32_1 = arith.constant 0 : i32
    return %c0_i32, %c0_i32_0 : i32, i32
  }
  func.func @transform_2(%arg0: i32, %arg1: i32) -> (i32, i32) {
    %c0_i32 = arith.constant 0 : i32
    %c0_i32_0 = arith.constant 0 : i32
    %c0_i32_1 = arith.constant 0 : i32
    return %c0_i32, %c0_i32_0 : i32, i32
  }
  func.func @transform_3(%arg0: i32, %arg1: i32) -> (i32, i32) {
    %c0_i32 = arith.constant 0 : i32
    %c0_i32_0 = arith.constant 0 : i32
    %c0_i32_1 = arith.constant 0 : i32
    return %c0_i32, %c0_i32_0 : i32, i32
  }
  func.func @transform_4(%arg0: i32, %arg1: i32) -> (i32, i32) {
    %c0_i32 = arith.constant 0 : i32
    %c0_i32_0 = arith.constant 0 : i32
    %c0_i32_1 = arith.constant 0 : i32
    return %c0_i32, %c0_i32_0 : i32, i32
  }
  func.func @transform_5(%arg0: i32, %arg1: i32) -> (i32, i32, i32) {
    %c0_i32 = arith.constant 0 : i32
    %c0_i32_0 = arith.constant 0 : i32
    return %arg0, %c0_i32, %arg1 : i32, i32, i32
  }
}

</mosaic_0001>

<llo_original>
// kernel: transition_layer.2
$region0: #{transition_layer.2}
  #allocation0 [shape = 'u32[]', space=smem, size = 0x4, offset = 0x4, fixed_abs, tag = 'smem constant byte address 0x4 - core index']
  #allocation1 [shape = 'u32[144,128]{1,0:T(1,128)}', space=vmem, size = 0x12000, scoped, tag = 'internal scratch']
  %s0 = inlined_call_operand.hbm [shape: f32[2,64,256], index: 0, kind: input, shape index: {}]
  %s1 = inlined_call_operand.vmem [shape: f32[2,64,1], index: 1, kind: output, shape index: {0}]
  %s2 = inlined_call_operand.vmem [shape: f32[2,64,1], index: 2, kind: output, shape index: {1}]
  %3 = xla_tuple %s1, %s2
  %s4 = sld [smem:[#allocation0]]
  $region53: #{transition_layer.2} parent=0
    _
  %s6 = ssub.s32 1, %s4
  %s7 = scalar_select 0, %s6, %s4
  $region1: #{transition_layer.2} parent=0
    #allocation2 [shape = 'u8[65536]{0}', space=vmem, size = 0x10000, scoped, tag = 'input window, operand 0']
    #allocation3 [shape = 's32[2]{0}', space=sflag, size = 0x8, scoped, tag = 'scoped memory for transition_layer.2']
    %8 = vsyncpa [#allocation3], 0
    %s9 = scalar_lea.sflag [#allocation3], 1
    %10 = vsyncpa %s9, 0
    loop: start=0, step=1, limit=6
    $region2: #{transition_layer.2} parent=1 // loop_pre_header
      _
    $region3: #{transition_layer.2} parent=1 // loop_header
      %s12 = sphi 0, %s16
      %p13 = scmp.ge.s32.totalorder %s12, 6
      %s19 = sphi 0, %s31
      %s20 = sphi 0, %s27
      %s21 = sphi 0, %s19
      %s22 = sphi 0, %s20
      %s23 = sphi 0, %s21
      %s24 = sphi 0, %s22
      %s36 = sphi 0, %s38
      %s39 = sphi 0, %s36
      %s40 = sphi 0, %s39
      %s56 = sphi 0, %s40
      %s62 = sphi 0, %s64
      %s65 = sphi 0, %s62
      %s66 = sphi 0, %s65
      %s82 = sphi 0, %s66
      %s88 = sphi 0, %s90
      %s91 = sphi 0, %s88
      %s92 = sphi 0, %s91
      %s108 = sphi 0, %s92
    $region4: #{transition_layer.2} parent=1 // loop_header_branch
      %15 = sbr.rel (%p13) target = $region8
    $region5: #{transition_layer.2} parent=1 // loop_body
      %s17 = ssub.s32 %s12, 1
      %s18 = ssub.s32 %s12, 2
      %s25 = sadd.s32 1, %s20
      %p26 = scmp.ge.s32.totalorder %s25, 2
      %s27 = scalar_select %p26, 0, %s25
      %s28 = sadd.s32 1, %s19
      %s29 = scalar_select %p26, %s28, %s19
      %p30 = scmp.ge.s32.totalorder %s29, 2
      %s31 = scalar_select %p30, 0, %s29
      %s32 = ssub.s32 %s19, %s31
      %s33 = ssub.s32 %s20, %s27
      %s34 = sor.u32 %s32, %s33
      %p35 = scmp.eq.s32.totalorder %s34, 0
      %s37 = sadd.s32 %s36, 1
      %s38 = scalar_select %p35, %s36, %s37
      %p41 = pneg %p35
      %p42 = scmp.eq.s32.totalorder %s12, 3
      %p43 = por %p41, %p42
      %p44 = scmp.ne.s32.totalorder %s36, %s39
      %p45 = scmp.eq.s32.totalorder %s12, 0
      %p46 = por %p44, %p45
      %p47 = scmp.ne.s32.totalorder %s36, %s39
      %p48 = scmp.eq.s32.totalorder %s17, 3
      %p49 = por %p47, %p48
      %p50 = scmp.ne.s32.totalorder %s39, %s40
      %p51 = scmp.eq.s32.totalorder %s17, 0
      %p52 = por %p50, %p51
      %p53 = scmp.ne.s32.totalorder %s39, %s40
      %p54 = scmp.eq.s32.totalorder %s18, 3
      %p55 = por %p53, %p54
      %p57 = scmp.ne.s32.totalorder %s40, %s56
      %p58 = scmp.eq.s32.totalorder %s18, 0
      %p59 = por %p57, %p58
      %s60 = ssub.s32 %s19, %s31
      %p61 = scmp.eq.s32.totalorder %s60, 0
      %s63 = sadd.s32 %s62, 1
      %s64 = scalar_select %p61, %s62, %s63
      %p67 = pneg %p61
      %p68 = scmp.eq.s32.totalorder %s12, 3
      %p69 = por %p67, %p68
      %p70 = scmp.ne.s32.totalorder %s62, %s65
      %p71 = scmp.eq.s32.totalorder %s12, 0
      %p72 = por %p70, %p71
      %p73 = scmp.ne.s32.totalorder %s62, %s65
      %p74 = scmp.eq.s32.totalorder %s17, 3
      %p75 = por %p73, %p74
      %p76 = scmp.ne.s32.totalorder %s65, %s66
      %p77 = scmp.eq.s32.totalorder %s17, 0
      %p78 = por %p76, %p77
      %p79 = scmp.ne.s32.totalorder %s65, %s66
      %p80 = scmp.eq.s32.totalorder %s18, 3
      %p81 = por %p79, %p80
      %p83 = scmp.ne.s32.totalorder %s66, %s82
      %p84 = scmp.eq.s32.totalorder %s18, 0
      %p85 = por %p83, %p84
      %s86 = ssub.s32 %s19, %s31
      %p87 = scmp.eq.s32.totalorder %s86, 0
      %s89 = sadd.s32 %s88, 1
      %s90 = scalar_select %p87, %s88, %s89
      %p93 = pneg %p87
      %p94 = scmp.eq.s32.totalorder %s12, 3
      %p95 = por %p93, %p94
      %p96 = scmp.ne.s32.totalorder %s88, %s91
      %p97 = scmp.eq.s32.totalorder %s12, 0
      %p98 = por %p96, %p97
      %p99 = scmp.ne.s32.totalorder %s88, %s91
      %p100 = scmp.eq.s32.totalorder %s17, 3
      %p101 = por %p99, %p100
      %p102 = scmp.ne.s32.totalorder %s91, %s92
      %p103 = scmp.eq.s32.totalorder %s17, 0
      %p104 = por %p102, %p103
      %p105 = scmp.ne.s32.totalorder %s91, %s92
      %p106 = scmp.eq.s32.totalorder %s18, 3
      %p107 = por %p105, %p106
      %p109 = scmp.ne.s32.totalorder %s92, %s108
      %p110 = scmp.eq.s32.totalorder %s18, 0
      %p111 = por %p109, %p110
      %p112 = scmp.le.s32.totalorder 1, %s12
      %p113 = scmp.lt.s32.totalorder %s12, 5
      %p114 = pnand %p112, %p113
      %p115 = pneg %p114
      // Predicated region
      $region9: #{transition_layer.2} parent=5 // pred_check
        _
      $region10: #{transition_layer.2} parent=5 // pred_check_branch
        %117 = sbr.rel (%p114) target = $region12
      $region11: #{transition_layer.2} parent=5 // pred_region
        %s118 = ssub.s32 %s12, 1
      $region12: #{transition_layer.2} parent=5 // pred_fallthru
        _
      %p119 = scmp.lt.s32.totalorder %s12, 4
      // Predicated region
      $region13: #{transition_layer.2} parent=5 // pred_check
        %p120 = pneg %p119
      $region14: #{transition_layer.2} parent=5 // pred_check_branch
        %122 = sbr.rel (%p120) target = $region16
      $region15: #{transition_layer.2} parent=5 // pred_region
        // Predicated region
        $region17: #{transition_layer.2} parent=15 // pred_check
          %p123 = pneg %p46
        $region18: #{transition_layer.2} parent=15 // pred_check_branch
          %125 = sbr.rel (%p123) target = $region20
        $region19: #{transition_layer.2} parent=15 // pred_region
          %s126 = sand.u32 %s36, 1
          %s127 = scalar_lea.sflag [#allocation3], %s126
          %s128 = sand.u32 %s36, 1
          %s129 = smul.addr %s128, 64
          %s130 = scalar_lea.vmem [#allocation2], %s129
          %s132 = ssub.s32 1024, 1024
          %133 = vsyncadd %s127, %s132
          %s134 = smul.addr %s19, 16
          %s135 = sadd.s32 %s20, %s134
          %s136 = smul.addr %s135, 128
          %s137 = scalar_lea.hbm %s0, %s136
          %s138 = sshll.u32 %s130, 4
          %s139 = int_to_ptr.vmem [resolvable:$true] %s138
          %144 = dma.hbm_to_vmem [thread:$0]  %s137, 1024, %s139, %s127, 256, 128, 8
        $region20: #{transition_layer.2} parent=15 // pred_fallthru
          _
      $region16: #{transition_layer.2} parent=5 // pred_fallthru
        _
      %p145 = scmp.le.s32.totalorder 1, %s12
      %p146 = scmp.lt.s32.totalorder %s12, 5
      %p147 = pnand %p145, %p146
      %p148 = pneg %p147
      // Predicated region
      $region21: #{transition_layer.2} parent=5 // pred_check
        _
      $region22: #{transition_layer.2} parent=5 // pred_check_branch
        %150 = sbr.rel (%p147) target = $region24
      $region23: #{transition_layer.2} parent=5 // pred_region
        %s151 = ssub.s32 %s12, 1
        %s152 = sand.u32 %s39, 1
        %s153 = scalar_lea.sflag [#allocation3], %s152
        %s154 = sand.u32 %s39, 1
        %s155 = smul.addr %s154, 64
        %s156 = scalar_lea.vmem [#allocation2], %s155
        // Predicated region
        $region25: #{transition_layer.2} parent=23 // pred_check
          %p157 = pneg %p52
        $region26: #{transition_layer.2} parent=23 // pred_check_branch
          %159 = sbr.rel (%p157) target = $region28
        $region27: #{transition_layer.2} parent=23 // pred_region
          %160 = dma.done %s153, 1024
        $region28: #{transition_layer.2} parent=23 // pred_fallthru
          _
        %s161 = sand.u32 %s39, 1
        %s162 = scalar_lea.sflag [#allocation3], %s161
        %s163 = sand.u32 %s39, 1
        %s164 = smul.addr %s163, 64
        %s165 = scalar_lea.vmem [#allocation2], %s164
        %p166 = pneg %p52
        %p167 = pneg %p49
        %p168 = pneg %p78
        %p169 = pneg %p75
        %p170 = scmp.lt.s32.totalorder %s21, 1
        %s171 = scalar_select %p170, %s21, 1
        %s172 = smul.addr %s171, 8
        %s173 = smul.addr %s172, 8
        %s174 = scalar_lea.vmem %s1, %s173
        %p175 = pneg %p104
        %p176 = pneg %p101
        %p177 = scmp.lt.s32.totalorder %s21, 1
        %s178 = scalar_select %p177, %s21, 1
        %s179 = smul.addr %s178, 8
        %s180 = smul.addr %s179, 8
        %s181 = scalar_lea.vmem %s2, %s180
        %p182 = scmp.lt.s32.totalorder %s21, 1
        %s183 = scalar_select %p182, %s21, 1
        %s184 = smul.addr %s183, 8
        %s185 = smul.addr %s184, 8
        %s186 = scalar_lea.vmem %s1, %s185
        %p187 = scmp.lt.s32.totalorder %s21, 1
        %s188 = scalar_select %p187, %s21, 1
        %s189 = smul.addr %s188, 8
        %s190 = smul.addr %s189, 8
        %s191 = scalar_lea.vmem %s2, %s190
        %p192 = scmp.eq.s32.totalorder %s22, 0
        // Predicated region
        $region29: #{transition_layer.2} parent=23 // pred_check
          %p193 = pneg %p192
        $region30: #{transition_layer.2} parent=23 // pred_check_branch
          %195 = sbr.rel (%p193) target = $region32
        $region31: #{transition_layer.2} parent=23 // pred_region
          %vm196 = vcmask 7168
          %197 = vst.msk [vmem:[%s186] sm:$0xff] %vm196, 0.0
          %198 = vst.msk [vmem:[%s186 + $0x8] sm:$0xff] %vm196, 0.0
          %199 = vst.msk [vmem:[%s186 + $0x10] sm:$0xff] %vm196, 0.0
          %200 = vst.msk [vmem:[%s186 + $0x18] sm:$0xff] %vm196, 0.0
          %201 = vst.msk [vmem:[%s186 + $0x20] sm:$0xff] %vm196, 0.0
          %202 = vst.msk [vmem:[%s186 + $0x28] sm:$0xff] %vm196, 0.0
          %203 = vst.msk [vmem:[%s186 + $0x30] sm:$0xff] %vm196, 0.0
          %204 = vst.msk [vmem:[%s186 + $0x38] sm:$0xff] %vm196, 0.0
          %205 = vst.msk [vmem:[%s191] sm:$0xff] %vm196, 0.0
          %206 = vst.msk [vmem:[%s191 + $0x8] sm:$0xff] %vm196, 0.0
          %207 = vst.msk [vmem:[%s191 + $0x10] sm:$0xff] %vm196, 0.0
          %208 = vst.msk [vmem:[%s191 + $0x18] sm:$0xff] %vm196, 0.0
          %209 = vst.msk [vmem:[%s191 + $0x20] sm:$0xff] %vm196, 0.0
          %210 = vst.msk [vmem:[%s191 + $0x28] sm:$0xff] %vm196, 0.0
          %211 = vst.msk [vmem:[%s191 + $0x30] sm:$0xff] %vm196, 0.0
          %212 = vst.msk [vmem:[%s191 + $0x38] sm:$0xff] %vm196, 0.0
        $region32: #{transition_layer.2} parent=23 // pred_fallthru
          _
        %v213 = vld [vmem:[%s156] sm:$0xff]
        %v214 = vld [vmem:[%s156 + $0x8] sm:$0xff]
        %v215 = vld [vmem:[%s156 + $0x10] sm:$0xff]
        %v216 = vld [vmem:[%s156 + $0x18] sm:$0xff]
        %v217 = vld [vmem:[%s156 + $0x20] sm:$0xff]
        %v218 = vld [vmem:[%s156 + $0x28] sm:$0xff]
        %v219 = vld [vmem:[%s156 + $0x30] sm:$0xff]
        %v220 = vld [vmem:[%s156 + $0x38] sm:$0xff]
        %v221 = vld [vmem:[%s186] sm:$0xff]
        %v222 = vld [vmem:[%s186 + $0x8] sm:$0xff]
        %v223 = vld [vmem:[%s186 + $0x10] sm:$0xff]
        %v224 = vld [vmem:[%s186 + $0x18] sm:$0xff]
        %v225 = vld [vmem:[%s186 + $0x20] sm:$0xff]
        %v226 = vld [vmem:[%s186 + $0x28] sm:$0xff]
        %v227 = vld [vmem:[%s186 + $0x30] sm:$0xff]
        %v228 = vld [vmem:[%s186 + $0x38] sm:$0xff]
        %229 = vadd.xlane.f32.xlu0 %v213
        %v230 = vpop.xlane.xlu0 %229
        %231 = vadd.xlane.f32.xlu0 %v214
        %v232 = vpop.xlane.xlu0 %231
        %233 = vadd.xlane.f32.xlu0 %v215
        %v234 = vpop.xlane.xlu0 %233
        %235 = vadd.xlane.f32.xlu0 %v216
        %v236 = vpop.xlane.xlu0 %235
        %237 = vadd.xlane.f32.xlu0 %v217
        %v238 = vpop.xlane.xlu0 %237
        %239 = vadd.xlane.f32.xlu0 %v218
        %v240 = vpop.xlane.xlu0 %239
        %241 = vadd.xlane.f32.xlu0 %v219
        %v242 = vpop.xlane.xlu0 %241
        %243 = vadd.xlane.f32.xlu0 %v220
        %v244 = vpop.xlane.xlu0 %243
        %v245 = vadd.f32 %v221, %v230
        %v246 = vadd.f32 %v222, %v232
        %v247 = vadd.f32 %v223, %v234
        %v248 = vadd.f32 %v224, %v236
        %v249 = vadd.f32 %v225, %v238
        %v250 = vadd.f32 %v226, %v240
        %v251 = vadd.f32 %v227, %v242
        %v252 = vadd.f32 %v228, %v244
        %vm253 = vcmask 7168
        %254 = vst.msk [vmem:[%s186] sm:$0xff] %vm253, %v245
        %255 = vst.msk [vmem:[%s186 + $0x8] sm:$0xff] %vm253, %v246
        %256 = vst.msk [vmem:[%s186 + $0x10] sm:$0xff] %vm253, %v247
        %257 = vst.msk [vmem:[%s186 + $0x18] sm:$0xff] %vm253, %v248
        %258 = vst.msk [vmem:[%s186 + $0x20] sm:$0xff] %vm253, %v249
        %259 = vst.msk [vmem:[%s186 + $0x28] sm:$0xff] %vm253, %v250
        %260 = vst.msk [vmem:[%s186 + $0x30] sm:$0xff] %vm253, %v251
        %261 = vst.msk [vmem:[%s186 + $0x38] sm:$0xff] %vm253, %v252
        %v262 = vld [vmem:[%s191] sm:$0xff]
        %v263 = vld [vmem:[%s191 + $0x8] sm:$0xff]
        %v264 = vld [vmem:[%s191 + $0x10] sm:$0xff]
        %v265 = vld [vmem:[%s191 + $0x18] sm:$0xff]
        %v266 = vld [vmem:[%s191 + $0x20] sm:$0xff]
        %v267 = vld [vmem:[%s191 + $0x28] sm:$0xff]
        %v268 = vld [vmem:[%s191 + $0x30] sm:$0xff]
        %v269 = vld [vmem:[%s191 + $0x38] sm:$0xff]
        %v270 = vmul.f32 %v213, %v213
        %v271 = vmul.f32 %v214, %v214
        %v272 = vmul.f32 %v215, %v215
        %v273 = vmul.f32 %v216, %v216
        %v274 = vmul.f32 %v217, %v217
        %v275 = vmul.f32 %v218, %v218
        %v276 = vmul.f32 %v219, %v219
        %v277 = vmul.f32 %v220, %v220
        %278 = vadd.xlane.f32.xlu0 %v270
        %v279 = vpop.xlane.xlu0 %278
        %280 = vadd.xlane.f32.xlu0 %v271
        %v281 = vpop.xlane.xlu0 %280
        %282 = vadd.xlane.f32.xlu0 %v272
        %v283 = vpop.xlane.xlu0 %282
        %284 = vadd.xlane.f32.xlu0 %v273
        %v285 = vpop.xlane.xlu0 %284
        %286 = vadd.xlane.f32.xlu0 %v274
        %v287 = vpop.xlane.xlu0 %286
        %288 = vadd.xlane.f32.xlu0 %v275
        %v289 = vpop.xlane.xlu0 %288
        %290 = vadd.xlane.f32.xlu0 %v276
        %v291 = vpop.xlane.xlu0 %290
        %292 = vadd.xlane.f32.xlu0 %v277
        %v293 = vpop.xlane.xlu0 %292
        %v294 = vadd.f32 %v262, %v279
        %v295 = vadd.f32 %v263, %v281
        %v296 = vadd.f32 %v264, %v283
        %v297 = vadd.f32 %v265, %v285
        %v298 = vadd.f32 %v266, %v287
        %v299 = vadd.f32 %v267, %v289
        %v300 = vadd.f32 %v268, %v291
        %v301 = vadd.f32 %v269, %v293
        %302 = vst.msk [vmem:[%s191] sm:$0xff] %vm253, %v294
        %303 = vst.msk [vmem:[%s191 + $0x8] sm:$0xff] %vm253, %v295
        %304 = vst.msk [vmem:[%s191 + $0x10] sm:$0xff] %vm253, %v296
        %305 = vst.msk [vmem:[%s191 + $0x18] sm:$0xff] %vm253, %v297
        %306 = vst.msk [vmem:[%s191 + $0x20] sm:$0xff] %vm253, %v298
        %307 = vst.msk [vmem:[%s191 + $0x28] sm:$0xff] %vm253, %v299
        %308 = vst.msk [vmem:[%s191 + $0x30] sm:$0xff] %vm253, %v300
        %309 = vst.msk [vmem:[%s191 + $0x38] sm:$0xff] %vm253, %v301
        %p310 = scmp.lt.s32.totalorder %s21, 1
        %s311 = scalar_select %p310, %s21, 1
        %s312 = smul.addr %s311, 8
        %s313 = smul.addr %s312, 8
        %s314 = scalar_lea.vmem %s1, %s313
        %p315 = scmp.lt.s32.totalorder %s21, 1
        %s316 = scalar_select %p315, %s21, 1
        %s317 = smul.addr %s316, 8
        %s318 = smul.addr %s317, 8
        %s319 = scalar_lea.vmem %s2, %s318
        // Predicated region
        $region33: #{transition_layer.2} parent=23 // pred_check
          %p320 = pneg %p75
        $region34: #{transition_layer.2} parent=23 // pred_check_branch
          %322 = sbr.rel (%p320) target = $region36
        $region35: #{transition_layer.2} parent=23 // pred_region
          _
        $region36: #{transition_layer.2} parent=23 // pred_fallthru
          _
        // Predicated region
        $region37: #{transition_layer.2} parent=23 // pred_check
          %p323 = pneg %p101
        $region38: #{transition_layer.2} parent=23 // pred_check_branch
          %325 = sbr.rel (%p323) target = $region40
        $region39: #{transition_layer.2} parent=23 // pred_region
          _
        $region40: #{transition_layer.2} parent=23 // pred_fallthru
          _
      $region24: #{transition_layer.2} parent=5 // pred_fallthru
        _
      %p326 = scmp.le.s32.totalorder 2, %s12
      // Predicated region
      $region41: #{transition_layer.2} parent=5 // pred_check
        %p327 = pneg %p326
      $region42: #{transition_layer.2} parent=5 // pred_check_branch
        %329 = sbr.rel (%p327) target = $region44
      $region43: #{transition_layer.2} parent=5 // pred_region
        %s330 = ssub.s32 %s12, 2
        // Predicated region
        $region45: #{transition_layer.2} parent=43 // pred_check
          %p331 = pneg %p81
        $region46: #{transition_layer.2} parent=43 // pred_check_branch
          %333 = sbr.rel (%p331) target = $region48
        $region47: #{transition_layer.2} parent=43 // pred_region
          %p334 = scmp.lt.s32.totalorder %s23, 1
          %s335 = scalar_select %p334, %s23, 1
          %s336 = smul.addr %s335, 8
          %s337 = smul.addr %s336, 8
          %s338 = scalar_lea.vmem %s1, %s337
        $region48: #{transition_layer.2} parent=43 // pred_fallthru
          _
        // Predicated region
        $region49: #{transition_layer.2} parent=43 // pred_check
          %p339 = pneg %p107
        $region50: #{transition_layer.2} parent=43 // pred_check_branch
          %341 = sbr.rel (%p339) target = $region52
        $region51: #{transition_layer.2} parent=43 // pred_region
          %p342 = scmp.lt.s32.totalorder %s23, 1
          %s343 = scalar_select %p342, %s23, 1
          %s344 = smul.addr %s343, 8
          %s345 = smul.addr %s344, 8
          %s346 = scalar_lea.vmem %s2, %s345
        $region52: #{transition_layer.2} parent=43 // pred_fallthru
          _
      $region44: #{transition_layer.2} parent=5 // pred_fallthru
        _
    $region6: #{transition_layer.2} parent=1 // loop_footer
      %s16 = sadd.s32 1, %s12
    $region7: #{transition_layer.2} parent=1 // loop_footer_branch
      %11 = sbr.rel target = $region3
    $region8: #{transition_layer.2} parent=1 // loop_exit
      _
    %347 = vsyncpa [#allocation3], 1
    %s348 = scalar_lea.sflag [#allocation3], 1
    %349 = vsyncpa %s348, 1

// kernel: transition_layer.3
$region0: #{transition_layer.3}
  #allocation0 [shape = 'u32[]', space=smem, size = 0x4, offset = 0x4, fixed_abs, tag = 'smem constant byte address 0x4 - core index']
  #allocation1 [shape = 'u32[144,128]{1,0:T(1,128)}', space=vmem, size = 0x12000, scoped, tag = 'internal scratch']
  %s0 = inlined_call_operand.vmem [shape: f32[2,64,256], index: 0, kind: input, shape index: {}]
  %s1 = inlined_call_operand.vmem [shape: f32[64,1], index: 1, kind: input, shape index: {}]
  %s2 = inlined_call_operand.vmem [shape: f32[64,1], index: 2, kind: input, shape index: {}]
  %s3 = inlined_call_operand.vmem [shape: bf16[32,64], index: 3, kind: input, shape index: {}]
  %s4 = inlined_call_operand.vmem [shape: bf16[256,128], index: 4, kind: input, shape index: {}]
  %s5 = inlined_call_operand.hbm [shape: f32[2,32,128], index: 5, kind: output, shape index: {}]
  %s6 = sld [smem:[#allocation0]]
  $region53: #{transition_layer.3} parent=0
    _
  %s8 = ssub.s32 1, %s6
  %s9 = scalar_select 0, %s8, %s6
  $region1: #{transition_layer.3} parent=0
    #allocation2 [shape = 'u8[32768]{0}', space=vmem, size = 0x8000, scoped, tag = 'output window, operand 0']
    #allocation3 [shape = 's32[2]{0}', space=sflag, size = 0x8, scoped, tag = 'scoped memory for transition_layer.3']
    %10 = vsyncpa [#allocation3], 0
    %s11 = scalar_lea.sflag [#allocation3], 1
    %12 = vsyncpa %s11, 0
    loop: start=0, step=1, limit=4
    $region2: #{transition_layer.3} parent=1 // loop_pre_header
      _
    $region3: #{transition_layer.3} parent=1 // loop_header
      %s14 = sphi 0, %s18
      %p15 = scmp.ge.s32.totalorder %s14, 4
      %s21 = sphi 0, %s33
      %s22 = sphi 0, %s29
      %s23 = sphi 0, %s21
      %s24 = sphi 0, %s22
      %s25 = sphi 0, %s23
      %s26 = sphi 0, %s24
      %s38 = sphi 0, %s40
      %s41 = sphi 0, %s38
      %s42 = sphi 0, %s41
      %s58 = sphi 0, %s42
      %s62 = sphi 0, %s62
      %s64 = sphi 0, %s62
      %s65 = sphi 0, %s64
      %s79 = sphi 0, %s65
      %s83 = sphi 0, %s83
      %s85 = sphi 0, %s83
      %s86 = sphi 0, %s85
      %s100 = sphi 0, %s86
      %s104 = sphi 0, %s104
      %s106 = sphi 0, %s104
      %s107 = sphi 0, %s106
      %s121 = sphi 0, %s107
      %s125 = sphi 0, %s125
      %s127 = sphi 0, %s125
      %s128 = sphi 0, %s127
      %s142 = sphi 0, %s128
      %s150 = sphi 0, %s152
      %s153 = sphi 0, %s150
      %s154 = sphi 0, %s153
      %s170 = sphi 0, %s154
    $region4: #{transition_layer.3} parent=1 // loop_header_branch
      %17 = sbr.rel (%p15) target = $region8
    $region5: #{transition_layer.3} parent=1 // loop_body
      %s19 = ssub.s32 %s14, 1
      %s20 = ssub.s32 %s14, 2
      %s27 = sadd.s32 1, %s22
      %p28 = scmp.ge.s32.totalorder %s27, 1
      %s29 = scalar_select %p28, 0, %s27
      %s30 = sadd.s32 1, %s21
      %s31 = scalar_select %p28, %s30, %s21
      %p32 = scmp.ge.s32.totalorder %s31, 2
      %s33 = scalar_select %p32, 0, %s31
      %s34 = ssub.s32 %s21, %s33
      %s35 = ssub.s32 %s22, %s29
      %s36 = sor.u32 %s34, %s35
      %p37 = scmp.eq.s32.totalorder %s36, 0
      %s39 = sadd.s32 %s38, 1
      %s40 = scalar_select %p37, %s38, %s39
      %p43 = pneg %p37
      %p44 = scmp.eq.s32.totalorder %s14, 1
      %p45 = por %p43, %p44
      %p46 = scmp.ne.s32.totalorder %s38, %s41
      %p47 = scmp.eq.s32.totalorder %s14, 0
      %p48 = por %p46, %p47
      %p49 = scmp.ne.s32.totalorder %s38, %s41
      %p50 = scmp.eq.s32.totalorder %s19, 1
      %p51 = por %p49, %p50
      %p52 = scmp.ne.s32.totalorder %s41, %s42
      %p53 = scmp.eq.s32.totalorder %s19, 0
      %p54 = por %p52, %p53
      %p55 = scmp.ne.s32.totalorder %s41, %s42
      %p56 = scmp.eq.s32.totalorder %s20, 1
      %p57 = por %p55, %p56
      %p59 = scmp.ne.s32.totalorder %s42, %s58
      %p60 = scmp.eq.s32.totalorder %s20, 0
      %p61 = por %p59, %p60
      %s63 = sadd.s32 %s62, 1
      %p66 = scmp.eq.s32.totalorder %s14, 1
      %p67 = scmp.ne.s32.totalorder %s62, %s64
      %p68 = scmp.eq.s32.totalorder %s14, 0
      %p69 = por %p67, %p68
      %p70 = scmp.ne.s32.totalorder %s62, %s64
      %p71 = scmp.eq.s32.totalorder %s19, 1
      %p72 = por %p70, %p71
      %p73 = scmp.ne.s32.totalorder %s64, %s65
      %p74 = scmp.eq.s32.totalorder %s19, 0
      %p75 = por %p73, %p74
      %p76 = scmp.ne.s32.totalorder %s64, %s65
      %p77 = scmp.eq.s32.totalorder %s20, 1
      %p78 = por %p76, %p77
      %p80 = scmp.ne.s32.totalorder %s65, %s79
      %p81 = scmp.eq.s32.totalorder %s20, 0
      %p82 = por %p80, %p81
      %s84 = sadd.s32 %s83, 1
      %p87 = scmp.eq.s32.totalorder %s14, 1
      %p88 = scmp.ne.s32.totalorder %s83, %s85
      %p89 = scmp.eq.s32.totalorder %s14, 0
      %p90 = por %p88, %p89
      %p91 = scmp.ne.s32.totalorder %s83, %s85
      %p92 = scmp.eq.s32.totalorder %s19, 1
      %p93 = por %p91, %p92
      %p94 = scmp.ne.s32.totalorder %s85, %s86
      %p95 = scmp.eq.s32.totalorder %s19, 0
      %p96 = por %p94, %p95
      %p97 = scmp.ne.s32.totalorder %s85, %s86
      %p98 = scmp.eq.s32.totalorder %s20, 1
      %p99 = por %p97, %p98
      %p101 = scmp.ne.s32.totalorder %s86, %s100
      %p102 = scmp.eq.s32.totalorder %s20, 0
      %p103 = por %p101, %p102
      %s105 = sadd.s32 %s104, 1
      %p108 = scmp.eq.s32.totalorder %s14, 1
      %p109 = scmp.ne.s32.totalorder %s104, %s106
      %p110 = scmp.eq.s32.totalorder %s14, 0
      %p111 = por %p109, %p110
      %p112 = scmp.ne.s32.totalorder %s104, %s106
      %p113 = scmp.eq.s32.totalorder %s19, 1
      %p114 = por %p112, %p113
      %p115 = scmp.ne.s32.totalorder %s106, %s107
      %p116 = scmp.eq.s32.totalorder %s19, 0
      %p117 = por %p115, %p116
      %p118 = scmp.ne.s32.totalorder %s106, %s107
      %p119 = scmp.eq.s32.totalorder %s20, 1
      %p120 = por %p118, %p119
      %p122 = scmp.ne.s32.totalorder %s107, %s121
      %p123 = scmp.eq.s32.totalorder %s20, 0
      %p124 = por %p122, %p123
      %s126 = sadd.s32 %s125, 1
      %p129 = scmp.eq.s32.totalorder %s14, 1
      %p130 = scmp.ne.s32.totalorder %s125, %s127
      %p131 = scmp.eq.s32.totalorder %s14, 0
      %p132 = por %p130, %p131
      %p133 = scmp.ne.s32.totalorder %s125, %s127
      %p134 = scmp.eq.s32.totalorder %s19, 1
      %p135 = por %p133, %p134
      %p136 = scmp.ne.s32.totalorder %s127, %s128
      %p137 = scmp.eq.s32.totalorder %s19, 0
      %p138 = por %p136, %p137
      %p139 = scmp.ne.s32.totalorder %s127, %s128
      %p140 = scmp.eq.s32.totalorder %s20, 1
      %p141 = por %p139, %p140
      %p143 = scmp.ne.s32.totalorder %s128, %s142
      %p144 = scmp.eq.s32.totalorder %s20, 0
      %p145 = por %p143, %p144
      %s146 = ssub.s32 %s21, %s33
      %s147 = ssub.s32 %s22, %s29
      %s148 = sor.u32 %s146, %s147
      %p149 = scmp.eq.s32.totalorder %s148, 0
      %s151 = sadd.s32 %s150, 1
      %s152 = scalar_select %p149, %s150, %s151
      %p155 = pneg %p149
      %p156 = scmp.eq.s32.totalorder %s14, 1
      %p157 = por %p155, %p156
      %p158 = scmp.ne.s32.totalorder %s150, %s153
      %p159 = scmp.eq.s32.totalorder %s14, 0
      %p160 = por %p158, %p159
      %p161 = scmp.ne.s32.totalorder %s150, %s153
      %p162 = scmp.eq.s32.totalorder %s19, 1
      %p163 = por %p161, %p162
      %p164 = scmp.ne.s32.totalorder %s153, %s154
      %p165 = scmp.eq.s32.totalorder %s19, 0
      %p166 = por %p164, %p165
      %p167 = scmp.ne.s32.totalorder %s153, %s154
      %p168 = scmp.eq.s32.totalorder %s20, 1
      %p169 = por %p167, %p168
      %p171 = scmp.ne.s32.totalorder %s154, %s170
      %p172 = scmp.eq.s32.totalorder %s20, 0
      %p173 = por %p171, %p172
      %p174 = scmp.le.s32.totalorder 1, %s14
      %p175 = scmp.lt.s32.totalorder %s14, 3
      %p176 = pnand %p174, %p175
      %p177 = pneg %p176
      // Predicated region
      $region9: #{transition_layer.3} parent=5 // pred_check
        _
      $region10: #{transition_layer.3} parent=5 // pred_check_branch
        %179 = sbr.rel (%p176) target = $region12
      $region11: #{transition_layer.3} parent=5 // pred_region
        %s180 = ssub.s32 %s14, 1
        // Predicated region
        $region13: #{transition_layer.3} parent=11 // pred_check
          %p181 = pneg %p75
        $region14: #{transition_layer.3} parent=11 // pred_check_branch
          %183 = sbr.rel (%p181) target = $region16
        $region15: #{transition_layer.3} parent=11 // pred_region
          _
        $region16: #{transition_layer.3} parent=11 // pred_fallthru
          _
        // Predicated region
        $region17: #{transition_layer.3} parent=11 // pred_check
          %p184 = pneg %p96
        $region18: #{transition_layer.3} parent=11 // pred_check_branch
          %186 = sbr.rel (%p184) target = $region20
        $region19: #{transition_layer.3} parent=11 // pred_region
          _
        $region20: #{transition_layer.3} parent=11 // pred_fallthru
          _
        // Predicated region
        $region21: #{transition_layer.3} parent=11 // pred_check
          %p187 = pneg %p117
        $region22: #{transition_layer.3} parent=11 // pred_check_branch
          %189 = sbr.rel (%p187) target = $region24
        $region23: #{transition_layer.3} parent=11 // pred_region
          _
        $region24: #{transition_layer.3} parent=11 // pred_fallthru
          _
        // Predicated region
        $region25: #{transition_layer.3} parent=11 // pred_check
          %p190 = pneg %p138
        $region26: #{transition_layer.3} parent=11 // pred_check_branch
          %192 = sbr.rel (%p190) target = $region28
        $region27: #{transition_layer.3} parent=11 // pred_region
          _
        $region28: #{transition_layer.3} parent=11 // pred_fallthru
          _
      $region12: #{transition_layer.3} parent=5 // pred_fallthru
        _
      %p193 = scmp.lt.s32.totalorder %s14, 2
      // Predicated region
      $region29: #{transition_layer.3} parent=5 // pred_check
        %p194 = pneg %p193
      $region30: #{transition_layer.3} parent=5 // pred_check_branch
        %196 = sbr.rel (%p194) target = $region32
      $region31: #{transition_layer.3} parent=5 // pred_region
        // Predicated region
        $region33: #{transition_layer.3} parent=31 // pred_check
          %p197 = pneg %p48
        $region34: #{transition_layer.3} parent=31 // pred_check_branch
          %199 = sbr.rel (%p197) target = $region36
        $region35: #{transition_layer.3} parent=31 // pred_region
          %s200 = smul.u32 2, %s22
          %p201 = scmp.lt.s32.totalorder %s21, 1
          %s202 = scalar_select %p201, %s21, 1
          %p203 = scmp.lt.s32.totalorder %s200, 1
          %s204 = scalar_select %p203, %s200, 1
          %s205 = smul.addr %s202, 16
          %s206 = sadd.s32 %s204, %s205
          %s207 = smul.addr %s206, 8
          %s208 = scalar_lea.vmem %s0, %s207
          %s209 = smul.u32 2, %s22
        $region36: #{transition_layer.3} parent=31 // pred_fallthru
          _
      $region32: #{transition_layer.3} parent=5 // pred_fallthru
        _
      %p210 = scmp.le.s32.totalorder 1, %s14
      %p211 = scmp.lt.s32.totalorder %s14, 3
      %p212 = pnand %p210, %p211
      %p213 = pneg %p212
      // Predicated region
      $region37: #{transition_layer.3} parent=5 // pred_check
        _
      $region38: #{transition_layer.3} parent=5 // pred_check_branch
        %215 = sbr.rel (%p212) target = $region40
      $region39: #{transition_layer.3} parent=5 // pred_region
        %s216 = ssub.s32 %s14, 1
        %s217 = smul.u32 2, %s24
        %p218 = scmp.lt.s32.totalorder %s23, 1
        %s219 = scalar_select %p218, %s23, 1
        %p220 = scmp.lt.s32.totalorder %s217, 1
        %s221 = scalar_select %p220, %s217, 1
        %s222 = smul.addr %s219, 16
        %s223 = sadd.s32 %s221, %s222
        %s224 = smul.addr %s223, 8
        %s225 = scalar_lea.vmem %s0, %s224
        %p226 = pneg %p54
        %p227 = pneg %p51
        %p228 = pneg %p75
        %p229 = pneg %p72
        %p230 = pneg %p96
        %p231 = pneg %p93
        %p232 = pneg %p117
        %p233 = pneg %p114
        %p234 = pneg %p138
        %p235 = pneg %p135
        %p236 = pneg %p166
        %p237 = pneg %p163
        %s238 = sand.u32 %s153, 1
        %s239 = scalar_lea.sflag [#allocation3], %s238
        %s240 = sand.u32 %s153, 1
        %s241 = smul.addr %s240, 32
        %s242 = scalar_lea.vmem [#allocation2], %s241
        %s243 = smul.u32 2, %s24
        %p244 = scmp.lt.s32.totalorder %s23, 1
        %s245 = scalar_select %p244, %s23, 1
        %p246 = scmp.lt.s32.totalorder %s243, 1
        %s247 = scalar_select %p246, %s243, 1
        %s248 = smul.addr %s245, 16
        %s249 = sadd.s32 %s247, %s248
        %s250 = smul.addr %s249, 8
        %s251 = scalar_lea.vmem %s0, %s250
        %s252 = smul.u32 2, %s24
        %v254 = vld [vmem:[%s251] sm:$0xff]
        %v255 = vld [vmem:[%s251 + $0x8] sm:$0xff]
        %v256 = vld [vmem:[%s251 + $0x10] sm:$0xff]
        %v257 = vld [vmem:[%s251 + $0x18] sm:$0xff]
        %v258 = vld [vmem:[%s251 + $0x20] sm:$0xff]
        %v259 = vld [vmem:[%s251 + $0x28] sm:$0xff]
        %v260 = vld [vmem:[%s251 + $0x30] sm:$0xff]
        %v261 = vld [vmem:[%s251 + $0x38] sm:$0xff]
        %v262 = vld [vmem:[%s251 + $0x40] sm:$0xff]
        %v263 = vld [vmem:[%s251 + $0x48] sm:$0xff]
        %v264 = vld [vmem:[%s251 + $0x50] sm:$0xff]
        %v265 = vld [vmem:[%s251 + $0x58] sm:$0xff]
        %v266 = vld [vmem:[%s251 + $0x60] sm:$0xff]
        %v267 = vld [vmem:[%s251 + $0x68] sm:$0xff]
        %v268 = vld [vmem:[%s251 + $0x70] sm:$0xff]
        %v269 = vld [vmem:[%s251 + $0x78] sm:$0xff]
        %v270 = vld [vmem:[%s1] sm:$0xff]
        %v271 = vld [vmem:[%s1 + $0x8] sm:$0xff]
        %v272 = vld [vmem:[%s1 + $0x10] sm:$0xff]
        %v273 = vld [vmem:[%s1 + $0x18] sm:$0xff]
        %v274 = vld [vmem:[%s1 + $0x20] sm:$0xff]
        %v275 = vld [vmem:[%s1 + $0x28] sm:$0xff]
        %v276 = vld [vmem:[%s1 + $0x30] sm:$0xff]
        %v277 = vld [vmem:[%s1 + $0x38] sm:$0xff]
        %279 = vset.pattern.permute.xlu0 0
        %280 = vperm.xlu0 %279, %v270
        %v281 = vpop.permute.xlu0 %280
        %284 = vset.pattern.permute.xlu0 0
        %285 = vperm.xlu0 %284, %v271
        %v286 = vpop.permute.xlu0 %285
        %289 = vset.pattern.permute.xlu0 0
        %290 = vperm.xlu0 %289, %v272
        %v291 = vpop.permute.xlu0 %290
        %294 = vset.pattern.permute.xlu0 0
        %295 = vperm.xlu0 %294, %v273
        %v296 = vpop.permute.xlu0 %295
        %299 = vset.pattern.permute.xlu0 0
        %300 = vperm.xlu0 %299, %v274
        %v301 = vpop.permute.xlu0 %300
        %304 = vset.pattern.permute.xlu0 0
        %305 = vperm.xlu0 %304, %v275
        %v306 = vpop.permute.xlu0 %305
        %309 = vset.pattern.permute.xlu0 0
        %310 = vperm.xlu0 %309, %v276
        %v311 = vpop.permute.xlu0 %310
        %314 = vset.pattern.permute.xlu0 0
        %315 = vperm.xlu0 %314, %v277
        %v316 = vpop.permute.xlu0 %315
        %v318 = vmul.f32 %v254, %v281
        %v319 = vmul.f32 %v255, %v281
        %v320 = vmul.f32 %v256, %v286
        %v321 = vmul.f32 %v257, %v286
        %v322 = vmul.f32 %v258, %v291
        %v323 = vmul.f32 %v259, %v291
        %v324 = vmul.f32 %v260, %v296
        %v325 = vmul.f32 %v261, %v296
        %v326 = vmul.f32 %v262, %v301
        %v327 = vmul.f32 %v263, %v301
        %v328 = vmul.f32 %v264, %v306
        %v329 = vmul.f32 %v265, %v306
        %v330 = vmul.f32 %v266, %v311
        %v331 = vmul.f32 %v267, %v311
        %v332 = vmul.f32 %v268, %v316
        %v333 = vmul.f32 %v269, %v316
        %v334 = vld [vmem:[%s2] sm:$0xff]
        %v335 = vld [vmem:[%s2 + $0x8] sm:$0xff]
        %v336 = vld [vmem:[%s2 + $0x10] sm:$0xff]
        %v337 = vld [vmem:[%s2 + $0x18] sm:$0xff]
        %v338 = vld [vmem:[%s2 + $0x20] sm:$0xff]
        %v339 = vld [vmem:[%s2 + $0x28] sm:$0xff]
        %v340 = vld [vmem:[%s2 + $0x30] sm:$0xff]
        %v341 = vld [vmem:[%s2 + $0x38] sm:$0xff]
        %343 = vset.pattern.permute.xlu0 0
        %344 = vperm.xlu0 %343, %v334
        %v345 = vpop.permute.xlu0 %344
        %348 = vset.pattern.permute.xlu0 0
        %349 = vperm.xlu0 %348, %v335
        %v350 = vpop.permute.xlu0 %349
        %353 = vset.pattern.permute.xlu0 0
        %354 = vperm.xlu0 %353, %v336
        %v355 = vpop.permute.xlu0 %354
        %358 = vset.pattern.permute.xlu0 0
        %359 = vperm.xlu0 %358, %v337
        %v360 = vpop.permute.xlu0 %359
        %363 = vset.pattern.permute.xlu0 0
        %364 = vperm.xlu0 %363, %v338
        %v365 = vpop.permute.xlu0 %364
        %368 = vset.pattern.permute.xlu0 0
        %369 = vperm.xlu0 %368, %v339
        %v370 = vpop.permute.xlu0 %369
        %373 = vset.pattern.permute.xlu0 0
        %374 = vperm.xlu0 %373, %v340
        %v375 = vpop.permute.xlu0 %374
        %378 = vset.pattern.permute.xlu0 0
        %379 = vperm.xlu0 %378, %v341
        %v380 = vpop.permute.xlu0 %379
        %v382 = vadd.f32 %v318, %v345
        %v383 = vadd.f32 %v319, %v345
        %v384 = vadd.f32 %v320, %v350
        %v385 = vadd.f32 %v321, %v350
        %v386 = vadd.f32 %v322, %v355
        %v387 = vadd.f32 %v323, %v355
        %v388 = vadd.f32 %v324, %v360
        %v389 = vadd.f32 %v325, %v360
        %v390 = vadd.f32 %v326, %v365
        %v391 = vadd.f32 %v327, %v365
        %v392 = vadd.f32 %v328, %v370
        %v393 = vadd.f32 %v329, %v370
        %v394 = vadd.f32 %v330, %v375
        %v395 = vadd.f32 %v331, %v375
        %v396 = vadd.f32 %v332, %v380
        %v397 = vadd.f32 %v333, %v380
        %v398 = vmax.f32 %v382, 0.0
        %v399 = vmax.f32 %v383, 0.0
        %v400 = vmax.f32 %v384, 0.0
        %v401 = vmax.f32 %v385, 0.0
        %v402 = vmax.f32 %v386, 0.0
        %v403 = vmax.f32 %v387, 0.0
        %v404 = vmax.f32 %v388, 0.0
        %v405 = vmax.f32 %v389, 0.0
        %v406 = vmax.f32 %v390, 0.0
        %v407 = vmax.f32 %v391, 0.0
        %v408 = vmax.f32 %v392, 0.0
        %v409 = vmax.f32 %v393, 0.0
        %v410 = vmax.f32 %v394, 0.0
        %v411 = vmax.f32 %v395, 0.0
        %v412 = vmax.f32 %v396, 0.0
        %v413 = vmax.f32 %v397, 0.0
        %v414 = vpack.c.bf16 %v400, %v398
        %v415 = vpack.c.bf16 %v401, %v399
        %v416 = vpack.c.bf16 %v404, %v402
        %v417 = vpack.c.bf16 %v405, %v403
        %v418 = vpack.c.bf16 %v408, %v406
        %v419 = vpack.c.bf16 %v409, %v407
        %v420 = vpack.c.bf16 %v412, %v410
        %v421 = vpack.c.bf16 %v413, %v411
        %v422 = vld [vmem:[%s3] sm:$0xf]
        %v423 = vld [vmem:[%s3 + $0x4] sm:$0xf]
        %v424 = vld [vmem:[%s3 + $0x8] sm:$0xf]
        %v425 = vld [vmem:[%s3 + $0xc] sm:$0xf]
        %v430 = vunpack.c.l.b16 %v422
        %v431 = vunpack.c.l.b16 %v423
        %v432 = vunpack.c.l.b16 %v424
        %v433 = vunpack.c.l.b16 %v425
        %v434 = vpack.c.b16 %v431, %v430
        %v435 = vpack.c.b16 %v433, %v432
        %vm436 = vcmask 523264
        %v438 = vsel %vm436, %v434, 0
        %v441 = vsel %vm436, %v435, 0
        %443 = vmatprep.subr.bf16.mxu0 %v415
        %444 = vmatpush1.bf16.msra.mxu0 %v414
        %445 = vmatprep.subr.bf16.mxu0 %v417
        %446 = vmatpush1.bf16.msra.mxu0 %v416
        %447 = vmatprep.subr.bf16.mxu0 %v419
        %448 = vmatpush1.bf16.msra.mxu0 %v418
        %449 = vmatprep.subr.bf16.mxu0 %v421
        %450 = vmatpush1.bf16.msra.mxu0 %v420
        %451 = vmatprep.subr.bf16.mxu0 0
        %452 = vmatpush1.bf16.msra.mxu0 0
        %453 = vmatprep.subr.bf16.mxu0 0
        %454 = vmatpush1.bf16.msra.mxu0 0
        %455 = vmatprep.subr.bf16.mxu0 0
        %456 = vmatpush1.bf16.msra.mxu0 0
        %457 = vmatprep.subr.bf16.mxu0 0
        %458 = vmatpush1.bf16.msra.mxu0 0
        %459 = vmatprep.subr.bf16.mxu0 0
        %460 = vmatpush1.bf16.msra.mxu0 0
        %461 = vmatprep.subr.bf16.mxu0 0
        %462 = vmatpush1.bf16.msra.mxu0 0
        %463 = vmatprep.subr.bf16.mxu0 0
        %464 = vmatpush1.bf16.msra.mxu0 0
        %465 = vmatprep.subr.bf16.mxu0 0
        %466 = vmatpush1.bf16.msra.mxu0 0
        %467 = vmatprep.subr.bf16.mxu0 0
        %468 = vmatpush1.bf16.msra.mxu0 0
        %469 = vmatprep.subr.bf16.mxu0 0
        %470 = vmatpush1.bf16.msra.mxu0 0
        %471 = vmatprep.subr.bf16.mxu0 0
        %472 = vmatpush1.bf16.msra.mxu0 0
        %473 = vmatprep.subr.bf16.mxu0 0
        %474 = vmatpush1.bf16.msra.mxu0 0
        %475 = vmatprep.mubr.bf16.mxu0 0
        %476 = vmatmul.mubr.bf16.gmra.mrb[0].mxu0 %v438
        %v477 = vpop.f32.mrb[0].mxu0
        %v478 = vadd.f32 0.0, %v477
        %v479 = vpop.f32.mrb[0].mxu0
        %v480 = vadd.f32 0.0, %v479
        %v481 = vpop.f32.mrb[0].mxu0
        %v482 = vadd.f32 0.0, %v481
        %v483 = vpop.f32.mrb[0].mxu0
        %v484 = vadd.f32 0.0, %v483
        %485 = vmatprep.mubr.bf16.mxu0 0
        %486 = vmatmul.mubr.bf16.gmra.mrb[0].mxu0 %v441
        %v487 = vpop.f32.mrb[0].mxu0
        %v488 = vadd.f32 0.0, %v487
        %v489 = vpop.f32.mrb[0].mxu0
        %v490 = vadd.f32 0.0, %v489
        %v491 = vpop.f32.mrb[0].mxu0
        %v492 = vadd.f32 0.0, %v491
        %v493 = vpop.f32.mrb[0].mxu0
        %v494 = vadd.f32 0.0, %v493
        %495 = vdwg.mxu0
        %v496 = vpack.c.bf16 %v482, %v478
        %v497 = vpack.c.bf16 %v484, %v480
        %v498 = vpack.c.bf16 %v492, %v488
        %v499 = vpack.c.bf16 %v494, %v490
        %v500 = vld [vmem:[%s4] sm:$0xf]
        %v501 = vld [vmem:[%s4 + $0x4] sm:$0xf]
        %v502 = vld [vmem:[%s4 + $0x8] sm:$0xf]
        %v503 = vld [vmem:[%s4 + $0xc] sm:$0xf]
        %v504 = vld [vmem:[%s4 + $0x10] sm:$0xf]
        %v505 = vld [vmem:[%s4 + $0x14] sm:$0xf]
        %v506 = vld [vmem:[%s4 + $0x18] sm:$0xf]
        %v507 = vld [vmem:[%s4 + $0x1c] sm:$0xf]
        %v508 = vld [vmem:[%s4 + $0x20] sm:$0xf]
        %v509 = vld [vmem:[%s4 + $0x24] sm:$0xf]
        %v510 = vld [vmem:[%s4 + $0x28] sm:$0xf]
        %v511 = vld [vmem:[%s4 + $0x2c] sm:$0xf]
        %v512 = vld [vmem:[%s4 + $0x30] sm:$0xf]
        %v513 = vld [vmem:[%s4 + $0x34] sm:$0xf]
        %v514 = vld [vmem:[%s4 + $0x38] sm:$0xf]
        %v515 = vld [vmem:[%s4 + $0x3c] sm:$0xf]
        %v516 = vld [vmem:[%s4 + $0x40] sm:$0xf]
        %v517 = vld [vmem:[%s4 + $0x44] sm:$0xf]
        %v518 = vld [vmem:[%s4 + $0x48] sm:$0xf]
        %v519 = vld [vmem:[%s4 + $0x4c] sm:$0xf]
        %v520 = vld [vmem:[%s4 + $0x50] sm:$0xf]
        %v521 = vld [vmem:[%s4 + $0x54] sm:$0xf]
        %v522 = vld [vmem:[%s4 + $0x58] sm:$0xf]
        %v523 = vld [vmem:[%s4 + $0x5c] sm:$0xf]
        %v524 = vld [vmem:[%s4 + $0x60] sm:$0xf]
        %v525 = vld [vmem:[%s4 + $0x64] sm:$0xf]
        %v526 = vld [vmem:[%s4 + $0x68] sm:$0xf]
        %v527 = vld [vmem:[%s4 + $0x6c] sm:$0xf]
        %v528 = vld [vmem:[%s4 + $0x70] sm:$0xf]
        %v529 = vld [vmem:[%s4 + $0x74] sm:$0xf]
        %v530 = vld [vmem:[%s4 + $0x78] sm:$0xf]
        %v531 = vld [vmem:[%s4 + $0x7c] sm:$0xf]
        %v564 = vunpack.c.l.b16 %v500
        %v565 = vunpack.c.l.b16 %v501
        %v566 = vunpack.c.l.b16 %v502
        %v567 = vunpack.c.l.b16 %v503
        %v568 = vunpack.c.l.b16 %v504
        %v569 = vunpack.c.l.b16 %v505
        %v570 = vunpack.c.l.b16 %v506
        %v571 = vunpack.c.l.b16 %v507
        %v572 = vunpack.c.l.b16 %v508
        %v573 = vunpack.c.l.b16 %v509
        %v574 = vunpack.c.l.b16 %v510
        %v575 = vunpack.c.l.b16 %v511
        %v576 = vunpack.c.l.b16 %v512
        %v577 = vunpack.c.l.b16 %v513
        %v578 = vunpack.c.l.b16 %v514
        %v579 = vunpack.c.l.b16 %v515
        %v580 = vunpack.c.l.b16 %v516
        %v581 = vunpack.c.l.b16 %v517
        %v582 = vunpack.c.l.b16 %v518
        %v583 = vunpack.c.l.b16 %v519
        %v584 = vunpack.c.l.b16 %v520
        %v585 = vunpack.c.l.b16 %v521
        %v586 = vunpack.c.l.b16 %v522
        %v587 = vunpack.c.l.b16 %v523
        %v588 = vunpack.c.l.b16 %v524
        %v589 = vunpack.c.l.b16 %v525
        %v590 = vunpack.c.l.b16 %v526
        %v591 = vunpack.c.l.b16 %v527
        %v592 = vunpack.c.l.b16 %v528
        %v593 = vunpack.c.l.b16 %v529
        %v594 = vunpack.c.l.b16 %v530
        %v595 = vunpack.c.l.b16 %v531
        %v596 = vpack.c.b16 %v565, %v564
        %v597 = vpack.c.b16 %v567, %v566
        %v598 = vpack.c.b16 %v569, %v568
        %v599 = vpack.c.b16 %v571, %v570
        %v600 = vpack.c.b16 %v573, %v572
        %v601 = vpack.c.b16 %v575, %v574
        %v602 = vpack.c.b16 %v577, %v576
        %v603 = vpack.c.b16 %v579, %v578
        %v604 = vpack.c.b16 %v581, %v580
        %v605 = vpack.c.b16 %v583, %v582
        %v606 = vpack.c.b16 %v585, %v584
        %v607 = vpack.c.b16 %v587, %v586
        %v608 = vpack.c.b16 %v589, %v588
        %v609 = vpack.c.b16 %v591, %v590
        %v610 = vpack.c.b16 %v593, %v592
        %v611 = vpack.c.b16 %v595, %v594
        %628 = vmatprep.subr.bf16.mxu0 0
        %629 = vmatpush1.bf16.msra.mxu0 %v596
        %630 = vmatprep.subr.bf16.mxu0 0
        %631 = vmatpush1.bf16.msra.mxu0 %v597
        %632 = vmatprep.subr.bf16.mxu0 0
        %633 = vmatpush1.bf16.msra.mxu0 %v598
        %634 = vmatprep.subr.bf16.mxu0 0
        %635 = vmatpush1.bf16.msra.mxu0 %v599
        %636 = vmatprep.subr.bf16.mxu0 0
        %637 = vmatpush1.bf16.msra.mxu0 %v600
        %638 = vmatprep.subr.bf16.mxu0 0
        %639 = vmatpush1.bf16.msra.mxu0 %v601
        %640 = vmatprep.subr.bf16.mxu0 0
        %641 = vmatpush1.bf16.msra.mxu0 %v602
        %642 = vmatprep.subr.bf16.mxu0 0
        %643 = vmatpush1.bf16.msra.mxu0 %v603
        %644 = vmatprep.subr.bf16.mxu0 0
        %645 = vmatpush1.bf16.msra.mxu0 %v604
        %646 = vmatprep.subr.bf16.mxu0 0
        %647 = vmatpush1.bf16.msra.mxu0 %v605
        %648 = vmatprep.subr.bf16.mxu0 0
        %649 = vmatpush1.bf16.msra.mxu0 %v606
        %650 = vmatprep.subr.bf16.mxu0 0
        %651 = vmatpush1.bf16.msra.mxu0 %v607
        %652 = vmatprep.subr.bf16.mxu0 0
        %653 = vmatpush1.bf16.msra.mxu0 %v608
        %654 = vmatprep.subr.bf16.mxu0 0
        %655 = vmatpush1.bf16.msra.mxu0 %v609
        %656 = vmatprep.subr.bf16.mxu0 0
        %657 = vmatpush1.bf16.msra.mxu0 %v610
        %658 = vmatprep.subr.bf16.mxu0 0
        %659 = vmatpush1.bf16.msra.mxu0 %v611
        %660 = vmatprep.mubr.bf16.mxu0 %v497
        %661 = vmatmul.mubr.bf16.gmra.mrb[0].mxu0 %v496
        %v662 = vpop.f32.mrb[0].mxu0
        %v663 = vadd.f32 0.0, %v662
        %v664 = vpop.f32.mrb[0].mxu0
        %v665 = vpop.f32.mrb[0].mxu0
        %v666 = vadd.f32 0.0, %v665
        %v667 = vpop.f32.mrb[0].mxu0
        %668 = vmatprep.mubr.bf16.mxu0 %v499
        %669 = vmatmul.mubr.bf16.gmra.mrb[0].mxu0 %v498
        %v670 = vpop.f32.mrb[0].mxu0
        %v671 = vadd.f32 0.0, %v670
        %v672 = vpop.f32.mrb[0].mxu0
        %v673 = vpop.f32.mrb[0].mxu0
        %v674 = vadd.f32 0.0, %v673
        %v675 = vpop.f32.mrb[0].mxu0
        %676 = vdwg.mxu0
        %677 = vst [vmem:[%s242] sm:$0xff] %v663
        %678 = vst [vmem:[%s242 + $0x8] sm:$0xff] %v666
        %679 = vst [vmem:[%s242 + $0x10] sm:$0xff] %v671
        %680 = vst [vmem:[%s242 + $0x18] sm:$0xff] %v674
        %s681 = sand.u32 %s153, 1
        %s682 = scalar_lea.sflag [#allocation3], %s681
        %s683 = sand.u32 %s153, 1
        %s684 = smul.addr %s683, 32
        %s685 = scalar_lea.vmem [#allocation2], %s684
        // Predicated region
        $region41: #{transition_layer.3} parent=39 // pred_check
          %p686 = pneg %p163
        $region42: #{transition_layer.3} parent=39 // pred_check_branch
          %688 = sbr.rel (%p686) target = $region44
        $region43: #{transition_layer.3} parent=39 // pred_region
          %s690 = ssub.s32 512, 512
          %691 = vsyncadd %s682, %s690
          %s692 = smul.addr %s23, 4
          %s693 = sadd.s32 %s24, %s692
          %s694 = smul.addr %s693, 128
          %s695 = scalar_lea.hbm %s5, %s694
          %s696 = sshll.u32 %s685, 4
          %s697 = int_to_ptr.vmem [resolvable:$true] %s696
          %702 = dma.vmem_to_hbm [thread:$0]  %s697, 512, %s695, %s682, 128, 128, 8
        $region44: #{transition_layer.3} parent=39 // pred_fallthru
          _
      $region40: #{transition_layer.3} parent=5 // pred_fallthru
        _
      %p703 = scmp.le.s32.totalorder 2, %s14
      // Predicated region
      $region45: #{transition_layer.3} parent=5 // pred_check
        %p704 = pneg %p703
      $region46: #{transition_layer.3} parent=5 // pred_check_branch
        %706 = sbr.rel (%p704) target = $region48
      $region47: #{transition_layer.3} parent=5 // pred_region
        %s707 = ssub.s32 %s14, 2
        // Predicated region
        $region49: #{transition_layer.3} parent=47 // pred_check
          %p708 = pneg %p169
        $region50: #{transition_layer.3} parent=47 // pred_check_branch
          %710 = sbr.rel (%p708) target = $region52
        $region51: #{transition_layer.3} parent=47 // pred_region
          %s711 = sand.u32 %s154, 1
          %s712 = scalar_lea.sflag [#allocation3], %s711
          %s713 = sand.u32 %s154, 1
          %s714 = smul.addr %s713, 32
          %s715 = scalar_lea.vmem [#allocation2], %s714
          %716 = dma.done %s712, 512
        $region52: #{transition_layer.3} parent=47 // pred_fallthru
          _
      $region48: #{transition_layer.3} parent=5 // pred_fallthru
        _
    $region6: #{transition_layer.3} parent=1 // loop_footer
      %s18 = sadd.s32 1, %s14
    $region7: #{transition_layer.3} parent=1 // loop_footer_branch
      %13 = sbr.rel target = $region3
    $region8: #{transition_layer.3} parent=1 // loop_exit
      _
    %717 = vsyncpa [#allocation3], 1
    %s718 = scalar_lea.sflag [#allocation3], 1
    %719 = vsyncpa %s718, 1

</llo_original>
